<compile_context>
chip_gen: v7x
topology: tpu7x:2x2x1
jax: 0.10.0
libtpu: 0.0.40
codegen_flags: <defaults>
</compile_context>

<pallas_src>
import functools

import jax
import jax.numpy as jnp
from jax.experimental import pallas as pl
from jax.experimental.pallas import tpu as pltpu


OUT_PAD = 128  # lane-dense fused output width; q1 -> lane 0, q2 -> lane 1


def _round_up(x, m):
    return (x + m - 1) // m * m


def _critic_kernel(s_ref, a_ref,
                   w1s_a_ref, w1a_a_ref, b1a_ref, w2a_ref, b2a_ref, w3a_ref,
                   w1s_b_ref, w1a_b_ref, b1b_ref, w2b_ref, b2b_ref, w3b_ref,
                   b3_ref, out_ref):
    cdt = w2a_ref.dtype              # MXU operand dtype (bf16 or f32)

    s = s_ref[...].astype(cdt)
    a = a_ref[...].astype(cdt)

    def q_head(w1s_ref, w1a_ref, b1_ref, w2_ref, b2_ref, w3_ref):
        # Layer 1: state/action kept as two small-K matmuls (no concatenate).
        h1 = jnp.maximum(
            jnp.dot(s, w1s_ref[...], preferred_element_type=jnp.float32)
            + jnp.dot(a, w1a_ref[...], preferred_element_type=jnp.float32)
            + b1_ref[...], 0.0)
        # Layer 2: unpadded (H, H) weight on the MXU, f32 accumulation,
        # f32 bias + ReLU on the VPU.
        h2 = jnp.maximum(
            jnp.dot(h1.astype(cdt), w2_ref[...],
                    preferred_element_type=jnp.float32) + b2_ref[...], 0.0)
        # Layer 3: output width is 1, so skip the MXU entirely -- VPU multiply
        # by the (1, H) f32 weight row + XLU cross-lane reduce -> (tile_b, 1).
        return jnp.sum(h2 * w3_ref[...], axis=-1, keepdims=True)

    q1 = q_head(w1s_a_ref, w1a_a_ref, b1a_ref, w2a_ref, b2a_ref, w3a_ref)
    q2 = q_head(w1s_b_ref, w1a_b_ref, b1b_ref, w2b_ref, b2b_ref, w3b_ref)

    # Assemble the lane-dense (tile_b, 128) output (unmasked stores):
    # q1 -> lane 0, q2 -> lane 1, other lanes zero.  b3 lives in lanes 0/1.
    lane = jax.lax.broadcasted_iota(jnp.int32, out_ref.shape, 1)
    q = jnp.where(lane == 0, q1, jnp.where(lane == 1, q2, 0.0)) + b3_ref[...]
    out_ref[...] = q.astype(out_ref.dtype)


def pack_critic_params(p, state_dim, action_dim, hidden_dim,
                       compute_dtype=jnp.bfloat16):
    """Re-layout the per-head params into the kernel layout (done once).

    MXU weights (w1/w2) are cast to `compute_dtype` (bf16 by default); biases
    and the tiny (1, H) w3 rows stay f32 (consumed by the VPU/XLU in f32).
    All arrays are stored UNPADDED -- full-array BlockSpecs need no (8,128)
    padding.
    """
    S, A, H = state_dim, action_dim, hidden_dim
    f32 = jnp.float32
    cd = compute_dtype

    def head(w1, b1, w2, b2, w3):
        w1 = jnp.asarray(w1, f32)
        return {
            "w1s": w1[:S].astype(cd),                  # (S, H)
            "w1a": w1[S:].astype(cd),                  # (A, H)
            "b1": jnp.asarray(b1, f32).reshape(1, H),
            "w2": jnp.asarray(w2, f32).astype(cd),     # (H, H), unpadded
            "b2": jnp.asarray(b2, f32).reshape(1, H),
            "w3": jnp.asarray(w3, f32).reshape(1, H),  # (H, 1) -> (1, H) row
        }

    ha = head(p["w1a"], p["b1a"], p["w2a"], p["b2a"], p["w3a"])
    hb = head(p["w1b"], p["b1b"], p["w2b"], p["b2b"], p["w3b"])

    b3 = jnp.zeros((1, OUT_PAD), f32)
    b3 = b3.at[0, 0].set(jnp.asarray(p["b3a"], f32).reshape(()))
    b3 = b3.at[0, 1].set(jnp.asarray(p["b3b"], f32).reshape(()))

    packed = {f"{k}_a": v for k, v in ha.items()}
    packed.update({f"{k}_b": v for k, v in hb.items()})
    packed["b3"] = b3
    return packed


_W_ORDER = ("w1s_a", "w1a_a", "b1_a", "w2_a", "b2_a", "w3_a",
            "w1s_b", "w1a_b", "b1_b", "w2_b", "b2_b", "w3_b", "b3")


def _vmem_limit_bytes(tile_b, S, A, H, cd_bytes):
    """Scoped-VMEM budget for the working set, with 2x headroom."""
    lanes_h = _round_up(H, 128)
    # resident weights/biases: x2 heads, x2 default pipeline buffers
    weights = 2 * 2 * (
        (_round_up(S, 8) + _round_up(A, 8) + _round_up(H, 8)) * lanes_h * cd_bytes
        + 3 * lanes_h * 4) + 2 * OUT_PAD * 4
    # double-buffered input/output batch tiles (f32)
    io = 2 * tile_b * (_round_up(S, 128) + _round_up(A, 128) + OUT_PAD) * 4
    # in-kernel activations: h1/h2 in f32 + compute-dtype casts, per head
    acts = 2 * tile_b * lanes_h * (4 + 4 + 2 * cd_bytes + 4)
    est = weights + io + acts
    # never below the 32 MiB v6e/v7x default; cap below v7x's 64 MiB physical
    return int(min(max(2 * est, 32 << 20), 64 << 20))


def critic_forward(state, action, packed, *, block_b=512, num_cores=2):
    """Returns (q1, q2), each (B, 1) float32 -- matches Critic.forward."""
    B, S = state.shape
    A = action.shape[1]
    H = packed["w2_a"].shape[0]
    cd_bytes = jnp.dtype(packed["w2_a"].dtype).itemsize

    # Batch tile: always a multiple of 8 (sublane), never larger than needed,
    # and small enough that the "parallel" grid axis has >= num_cores steps
    # whenever B > 8 (keeps both v7x TensorCores busy; on v5e/v6e the extra
    # grid step costs ~0.35 us, negligible).
    block_b = max(8, _round_up(block_b, 8))
    tile_b = min(block_b, max(8, _round_up(pl.cdiv(B, num_cores), 8)))
    grid_b = pl.cdiv(B, tile_b)
    b_pad = grid_b * tile_b
    if b_pad != B:
        state = jnp.pad(state, ((0, b_pad - B), (0, 0)))
        action = jnp.pad(action, ((0, b_pad - B), (0, 0)))

    w_args = tuple(packed[k] for k in _W_ORDER)
    # Weights: full-array blocks with a constant index_map -> DMA'd once and
    # resident in VMEM across batch tiles (double-buffered by default, but the
    # unpadded bf16 residents are < 1 MB so that overhead is negligible).
    resident = [pl.BlockSpec(w.shape, lambda i: (0, 0)) for w in w_args]

    out = pl.pallas_call(
        _critic_kernel,
        out_shape=jax.ShapeDtypeStruct((b_pad, OUT_PAD), jnp.float32),
        grid_spec=pltpu.PrefetchScalarGridSpec(
            num_scalar_prefetch=0,
            grid=(grid_b,),
            in_specs=[pl.BlockSpec((tile_b, S), lambda i: (i, 0)),
                      pl.BlockSpec((tile_b, A), lambda i: (i, 0))] + resident,
            out_specs=pl.BlockSpec((tile_b, OUT_PAD), lambda i: (i, 0)),
        ),
        compiler_params=pltpu.CompilerParams(
            dimension_semantics=("parallel",),
            vmem_limit_bytes=_vmem_limit_bytes(tile_b, S, A, H, cd_bytes),
        ),
    )(state, action, *w_args)

    return out[:B, 0:1], out[:B, 1:2]


def xavier_uniform(key, fan_in, fan_out, dtype=jnp.float32):
    # matches torch.nn.init.xavier_uniform_ (gain=1)
    limit = (6.0 / (fan_in + fan_out)) ** 0.5
    return jax.random.uniform(key, (fan_in, fan_out), dtype,
                              minval=-limit, maxval=limit)


def init_critic_params(key, state_dim, action_dim, hidden_dim=400):
    in_dim = state_dim + action_dim
    keys = jax.random.split(key, 6)
    # biases constant-initialized to 0.0, as in Critic._init_weights
    return {
        "w1a": xavier_uniform(keys[0], in_dim, hidden_dim),
        "b1a": jnp.zeros((1, hidden_dim), jnp.float32),
        "w2a": xavier_uniform(keys[1], hidden_dim, hidden_dim),
        "b2a": jnp.zeros((1, hidden_dim), jnp.float32),
        "w3a": xavier_uniform(keys[2], hidden_dim, 1),
        "b3a": jnp.zeros((1, 1), jnp.float32),
        "w1b": xavier_uniform(keys[3], in_dim, hidden_dim),
        "b1b": jnp.zeros((1, hidden_dim), jnp.float32),
        "w2b": xavier_uniform(keys[4], hidden_dim, hidden_dim),
        "b2b": jnp.zeros((1, hidden_dim), jnp.float32),
        "w3b": xavier_uniform(keys[5], hidden_dim, 1),
        "b3b": jnp.zeros((1, 1), jnp.float32),
    }


def critic_forward_ref(state, action, p):
    sa = jnp.concatenate([state, action], axis=1)
    hi = jax.lax.Precision.HIGHEST

    def mlp(w1, b1, w2, b2, w3, b3):
        h = jnp.maximum(jnp.dot(sa, w1, precision=hi) + b1, 0.0)
        h = jnp.maximum(jnp.dot(h, w2, precision=hi) + b2, 0.0)
        return jnp.dot(h, w3, precision=hi) + b3

    return (mlp(p["w1a"], p["b1a"], p["w2a"], p["b2a"], p["w3a"], p["b3a"]),
            mlp(p["w1b"], p["b1b"], p["w2b"], p["b2b"], p["w3b"], p["b3b"]))


if __name__ == "__main__":
    # HalfCheetah-like small dims (kernel-test sizes)
    B, STATE_DIM, ACTION_DIM, HIDDEN = 8, 17, 6, 32

    key = jax.random.PRNGKey(0)
    k_state, k_action, k_params, k_bias = jax.random.split(key, 4)

    state = jax.random.normal(k_state, (B, STATE_DIM), jnp.float32)
    action = jax.random.normal(k_action, (B, ACTION_DIM), jnp.float32)
    params = init_critic_params(k_params, STATE_DIM, ACTION_DIM, HIDDEN)

    # Perturb biases (module inits them to 0) so the bias packing / broadcast
    # path is actually exercised by the correctness check.
    bkeys = jax.random.split(k_bias, 6)
    for i, name in enumerate(["b1a", "b2a", "b3a", "b1b", "b2b", "b3b"]):
        params[name] = 0.1 * jax.random.normal(bkeys[i], params[name].shape,
                                               jnp.float32)

    q1_ref, q2_ref = critic_forward_ref(state, action, params)

    # --- f32 packing, single batch tile: tight tolerance ---
    packed_f32 = pack_critic_params(params, STATE_DIM, ACTION_DIM, HIDDEN,
                                    compute_dtype=jnp.float32)
    q1, q2 = jax.jit(critic_forward)(state, action, packed_f32)
    jax.block_until_ready((q1, q2))
    assert q1.shape == (B, 1) and q2.shape == (B, 1)
    assert jnp.allclose(q1, q1_ref, atol=2e-5, rtol=2e-5)
    assert jnp.allclose(q2, q2_ref, atol=2e-5, rtol=2e-5)

    # --- bf16 (default) packing: looser tolerance ---
    packed_bf16 = pack_critic_params(params, STATE_DIM, ACTION_DIM, HIDDEN)
    q1b, q2b = jax.jit(critic_forward)(state, action, packed_bf16)
    jax.block_until_ready((q1b, q2b))
    assert jnp.allclose(q1b, q1_ref, atol=5e-2, rtol=5e-2)
    assert jnp.allclose(q2b, q2_ref, atol=5e-2, rtol=5e-2)

    # --- multi-tile grid: batch split across >= 2 grid steps (v7x 2-core
    #     path), with batch padding ---
    B2 = 40
    state2 = jax.random.normal(jax.random.PRNGKey(1), (B2, STATE_DIM),
                               jnp.float32)
    action2 = jax.random.normal(jax.random.PRNGKey(2), (B2, ACTION_DIM),
                                jnp.float32)
    q1t_ref, q2t_ref = critic_forward_ref(state2, action2, params)

    q1t, q2t = jax.jit(critic_forward)(state2, action2, packed_bf16)  # grid=(2,)
    jax.block_until_ready((q1t, q2t))
    assert jnp.allclose(q1t, q1t_ref, atol=5e-2, rtol=5e-2)
    assert jnp.allclose(q2t, q2t_ref, atol=5e-2, rtol=5e-2)

    # --- non-multiple-of-8 caller block_b (rounded to 16 internally, grid=(3,)) ---
    fwd_small = jax.jit(functools.partial(critic_forward, block_b=12))
    q1s, q2s = fwd_small(state2, action2, packed_f32)
    jax.block_until_ready((q1s, q2s))
    assert jnp.allclose(q1s, q1t_ref, atol=2e-5, rtol=2e-5)
    assert jnp.allclose(q2s, q2t_ref, atol=2e-5, rtol=2e-5)

    print("KERNEL_OK")
</pallas_src>

<mosaic_0001>
module attributes {stable_mosaic.version = 11 : i64} {
  func.func @_critic_kernel(%arg0: i32, %arg1: memref<8x17xf32, #tpu.memory_space<vmem>>, %arg2: memref<8x6xf32, #tpu.memory_space<vmem>>, %arg3: memref<17x32xf32, #tpu.memory_space<vmem>>, %arg4: memref<6x32xf32, #tpu.memory_space<vmem>>, %arg5: memref<1x32xf32, #tpu.memory_space<vmem>>, %arg6: memref<32x32xf32, #tpu.memory_space<vmem>>, %arg7: memref<1x32xf32, #tpu.memory_space<vmem>>, %arg8: memref<1x32xf32, #tpu.memory_space<vmem>>, %arg9: memref<17x32xf32, #tpu.memory_space<vmem>>, %arg10: memref<6x32xf32, #tpu.memory_space<vmem>>, %arg11: memref<1x32xf32, #tpu.memory_space<vmem>>, %arg12: memref<32x32xf32, #tpu.memory_space<vmem>>, %arg13: memref<1x32xf32, #tpu.memory_space<vmem>>, %arg14: memref<1x32xf32, #tpu.memory_space<vmem>>, %arg15: memref<1x128xf32, #tpu.memory_space<vmem>>, %arg16: memref<8x128xf32, #tpu.memory_space<vmem>>) attributes {dimension_semantics = [#tpu.dimension_semantics<parallel>], iteration_bounds = array<i64: 1>, scalar_prefetch = 0 : i64, scratch_operands = 0 : i64, tpu.core_type = #tpu.core_type<tc>, window_params = [{transform_indices = @transform_0, window_bounds = array<i64: 8, 17>}, {transform_indices = @transform_1, window_bounds = array<i64: 8, 6>}, {pipeline_mode = #tpu.pipeline_mode<synchronous>, transform_indices = @transform_2, window_bounds = array<i64: 17, 32>}, {pipeline_mode = #tpu.pipeline_mode<synchronous>, transform_indices = @transform_3, window_bounds = array<i64: 6, 32>}, {pipeline_mode = #tpu.pipeline_mode<synchronous>, transform_indices = @transform_4, window_bounds = array<i64: 1, 32>}, {pipeline_mode = #tpu.pipeline_mode<synchronous>, transform_indices = @transform_5, window_bounds = array<i64: 32, 32>}, {pipeline_mode = #tpu.pipeline_mode<synchronous>, transform_indices = @transform_6, window_bounds = array<i64: 1, 32>}, {pipeline_mode = #tpu.pipeline_mode<synchronous>, transform_indices = @transform_7, window_bounds = array<i64: 1, 32>}, {pipeline_mode = #tpu.pipeline_mode<synchronous>, transform_indices = @transform_8, window_bounds = array<i64: 17, 32>}, {pipeline_mode = #tpu.pipeline_mode<synchronous>, transform_indices = @transform_9, window_bounds = array<i64: 6, 32>}, {pipeline_mode = #tpu.pipeline_mode<synchronous>, transform_indices = @transform_10, window_bounds = array<i64: 1, 32>}, {pipeline_mode = #tpu.pipeline_mode<synchronous>, transform_indices = @transform_11, window_bounds = array<i64: 32, 32>}, {pipeline_mode = #tpu.pipeline_mode<synchronous>, transform_indices = @transform_12, window_bounds = array<i64: 1, 32>}, {pipeline_mode = #tpu.pipeline_mode<synchronous>, transform_indices = @transform_13, window_bounds = array<i64: 1, 32>}, {pipeline_mode = #tpu.pipeline_mode<synchronous>, transform_indices = @transform_14, window_bounds = array<i64: 1, 128>}, {transform_indices = @transform_15, window_bounds = array<i64: 8, 128>}]} {
    %c0 = arith.constant 0 : index
    %c0_0 = arith.constant 0 : index
    %0 = vector.load %arg1[%c0, %c0_0] : memref<8x17xf32, #tpu.memory_space<vmem>>, vector<8x17xf32>
    %c0_1 = arith.constant 0 : index
    %c0_2 = arith.constant 0 : index
    %1 = vector.load %arg2[%c0_1, %c0_2] : memref<8x6xf32, #tpu.memory_space<vmem>>, vector<8x6xf32>
    %c0_3 = arith.constant 0 : index
    %c0_4 = arith.constant 0 : index
    %2 = vector.load %arg3[%c0_3, %c0_4] : memref<17x32xf32, #tpu.memory_space<vmem>>, vector<17x32xf32>
    %cst = arith.constant dense<0.000000e+00> : vector<8x32xf32>
    %3 = tpu.matmul %0, %2, %cst {dimension_numbers = #tpu.dot_dimension_numbers<[1], [0], [0], [1], [0, 0, 1, 1], [], []>} : vector<8x17xf32>, vector<17x32xf32>, vector<8x32xf32> -> vector<8x32xf32>
    %c0_5 = arith.constant 0 : index
    %c0_6 = arith.constant 0 : index
    %4 = vector.load %arg4[%c0_5, %c0_6] : memref<6x32xf32, #tpu.memory_space<vmem>>, vector<6x32xf32>
    %cst_7 = arith.constant dense<0.000000e+00> : vector<8x32xf32>
    %5 = tpu.matmul %1, %4, %cst_7 {dimension_numbers = #tpu.dot_dimension_numbers<[1], [0], [0], [1], [0, 0, 1, 1], [], []>} : vector<8x6xf32>, vector<6x32xf32>, vector<8x32xf32> -> vector<8x32xf32>
    %6 = arith.addf %3, %5 : vector<8x32xf32>
    %c0_8 = arith.constant 0 : index
    %c0_9 = arith.constant 0 : index
    %7 = vector.load %arg5[%c0_8, %c0_9] : memref<1x32xf32, #tpu.memory_space<vmem>>, vector<1x32xf32>
    %8 = vector.broadcast %7 : vector<1x32xf32> to vector<8x32xf32>
    %9 = arith.addf %6, %8 : vector<8x32xf32>
    %cst_10 = arith.constant 0.000000e+00 : f32
    %10 = vector.broadcast %cst_10 : f32 to vector<8x32xf32>
    %11 = arith.maximumf %9, %10 : vector<8x32xf32>
    %c0_11 = arith.constant 0 : index
    %c0_12 = arith.constant 0 : index
    %12 = vector.load %arg6[%c0_11, %c0_12] : memref<32x32xf32, #tpu.memory_space<vmem>>, vector<32x32xf32>
    %cst_13 = arith.constant dense<0.000000e+00> : vector<8x32xf32>
    %13 = tpu.matmul %11, %12, %cst_13 {dimension_numbers = #tpu.dot_dimension_numbers<[1], [0], [0], [1], [0, 0, 1, 1], [], []>} : vector<8x32xf32>, vector<32x32xf32>, vector<8x32xf32> -> vector<8x32xf32>
    %c0_14 = arith.constant 0 : index
    %c0_15 = arith.constant 0 : index
    %14 = vector.load %arg7[%c0_14, %c0_15] : memref<1x32xf32, #tpu.memory_space<vmem>>, vector<1x32xf32>
    %15 = vector.broadcast %14 : vector<1x32xf32> to vector<8x32xf32>
    %16 = arith.addf %13, %15 : vector<8x32xf32>
    %cst_16 = arith.constant 0.000000e+00 : f32
    %17 = vector.broadcast %cst_16 : f32 to vector<8x32xf32>
    %18 = arith.maximumf %16, %17 : vector<8x32xf32>
    %c0_17 = arith.constant 0 : index
    %c0_18 = arith.constant 0 : index
    %19 = vector.load %arg8[%c0_17, %c0_18] : memref<1x32xf32, #tpu.memory_space<vmem>>, vector<1x32xf32>
    %20 = vector.broadcast %19 : vector<1x32xf32> to vector<8x32xf32>
    %21 = arith.mulf %18, %20 : vector<8x32xf32>
    %cst_19 = arith.constant dense<0.000000e+00> : vector<8xf32>
    %22 = vector.multi_reduction <add>, %21, %cst_19 [1] : vector<8x32xf32> to vector<8xf32>
    %23 = vector.shape_cast %22 : vector<8xf32> to vector<8x1xf32>
    %c0_20 = arith.constant 0 : index
    %c0_21 = arith.constant 0 : index
    %24 = vector.load %arg9[%c0_20, %c0_21] : memref<17x32xf32, #tpu.memory_space<vmem>>, vector<17x32xf32>
    %cst_22 = arith.constant dense<0.000000e+00> : vector<8x32xf32>
    %25 = tpu.matmul %0, %24, %cst_22 {dimension_numbers = #tpu.dot_dimension_numbers<[1], [0], [0], [1], [0, 0, 1, 1], [], []>} : vector<8x17xf32>, vector<17x32xf32>, vector<8x32xf32> -> vector<8x32xf32>
    %c0_23 = arith.constant 0 : index
    %c0_24 = arith.constant 0 : index
    %26 = vector.load %arg10[%c0_23, %c0_24] : memref<6x32xf32, #tpu.memory_space<vmem>>, vector<6x32xf32>
    %cst_25 = arith.constant dense<0.000000e+00> : vector<8x32xf32>
    %27 = tpu.matmul %1, %26, %cst_25 {dimension_numbers = #tpu.dot_dimension_numbers<[1], [0], [0], [1], [0, 0, 1, 1], [], []>} : vector<8x6xf32>, vector<6x32xf32>, vector<8x32xf32> -> vector<8x32xf32>
    %28 = arith.addf %25, %27 : vector<8x32xf32>
    %c0_26 = arith.constant 0 : index
    %c0_27 = arith.constant 0 : index
    %29 = vector.load %arg11[%c0_26, %c0_27] : memref<1x32xf32, #tpu.memory_space<vmem>>, vector<1x32xf32>
    %30 = vector.broadcast %29 : vector<1x32xf32> to vector<8x32xf32>
    %31 = arith.addf %28, %30 : vector<8x32xf32>
    %cst_28 = arith.constant 0.000000e+00 : f32
    %32 = vector.broadcast %cst_28 : f32 to vector<8x32xf32>
    %33 = arith.maximumf %31, %32 : vector<8x32xf32>
    %c0_29 = arith.constant 0 : index
    %c0_30 = arith.constant 0 : index
    %34 = vector.load %arg12[%c0_29, %c0_30] : memref<32x32xf32, #tpu.memory_space<vmem>>, vector<32x32xf32>
    %cst_31 = arith.constant dense<0.000000e+00> : vector<8x32xf32>
    %35 = tpu.matmul %33, %34, %cst_31 {dimension_numbers = #tpu.dot_dimension_numbers<[1], [0], [0], [1], [0, 0, 1, 1], [], []>} : vector<8x32xf32>, vector<32x32xf32>, vector<8x32xf32> -> vector<8x32xf32>
    %c0_32 = arith.constant 0 : index
    %c0_33 = arith.constant 0 : index
    %36 = vector.load %arg13[%c0_32, %c0_33] : memref<1x32xf32, #tpu.memory_space<vmem>>, vector<1x32xf32>
    %37 = vector.broadcast %36 : vector<1x32xf32> to vector<8x32xf32>
    %38 = arith.addf %35, %37 : vector<8x32xf32>
    %cst_34 = arith.constant 0.000000e+00 : f32
    %39 = vector.broadcast %cst_34 : f32 to vector<8x32xf32>
    %40 = arith.maximumf %38, %39 : vector<8x32xf32>
    %c0_35 = arith.constant 0 : index
    %c0_36 = arith.constant 0 : index
    %41 = vector.load %arg14[%c0_35, %c0_36] : memref<1x32xf32, #tpu.memory_space<vmem>>, vector<1x32xf32>
    %42 = vector.broadcast %41 : vector<1x32xf32> to vector<8x32xf32>
    %43 = arith.mulf %40, %42 : vector<8x32xf32>
    %cst_37 = arith.constant dense<0.000000e+00> : vector<8xf32>
    %44 = vector.multi_reduction <add>, %43, %cst_37 [1] : vector<8x32xf32> to vector<8xf32>
    %45 = vector.shape_cast %44 : vector<8xf32> to vector<8x1xf32>
    %46 = tpu.iota {dimensions = array<i32: 1>} : vector<8x128xi32>
    %c0_i32 = arith.constant 0 : i32
    %47 = vector.broadcast %c0_i32 : i32 to vector<8x128xi32>
    %48 = arith.cmpi eq, %46, %47 : vector<8x128xi32>
    %c1_i32 = arith.constant 1 : i32
    %49 = vector.broadcast %c1_i32 : i32 to vector<8x128xi32>
    %50 = arith.cmpi eq, %46, %49 : vector<8x128xi32>
    %cst_38 = arith.constant 0.000000e+00 : f32
    %51 = vector.shape_cast %45 : vector<8x1xf32> to vector<8x1xf32>
    %52 = vector.broadcast %51 : vector<8x1xf32> to vector<8x128xf32>
    %53 = vector.broadcast %cst_38 : f32 to vector<8x128xf32>
    %54 = arith.select %50, %52, %53 : vector<8x128xi1>, vector<8x128xf32>
    %55 = vector.shape_cast %23 : vector<8x1xf32> to vector<8x1xf32>
    %56 = vector.broadcast %55 : vector<8x1xf32> to vector<8x128xf32>
    %57 = arith.select %48, %56, %54 : vector<8x128xi1>, vector<8x128xf32>
    %c0_39 = arith.constant 0 : index
    %c0_40 = arith.constant 0 : index
    %58 = vector.load %arg15[%c0_39, %c0_40] : memref<1x128xf32, #tpu.memory_space<vmem>>, vector<1x128xf32>
    %59 = vector.broadcast %58 : vector<1x128xf32> to vector<8x128xf32>
    %60 = arith.addf %57, %59 : vector<8x128xf32>
    %c0_41 = arith.constant 0 : index
    %c0_42 = arith.constant 0 : index
    %61 = vector.load %arg16[%c0_41, %c0_42] : memref<8x128xf32, #tpu.memory_space<vmem>>, vector<8x128xf32>
    tpu.vector_store %arg16[%c0_41, %c0_42], %60 {strides = array<i32>} : memref<8x128xf32, #tpu.memory_space<vmem>>, vector<8x128xf32>,
    return
  }
  func.func @transform_0(%arg0: i32) -> (i32, i32) {
    %c0_i32 = arith.constant 0 : i32
    %c0_i32_0 = arith.constant 0 : i32
    return %arg0, %c0_i32 : i32, i32
  }
  func.func @transform_1(%arg0: i32) -> (i32, i32) {
    %c0_i32 = arith.constant 0 : i32
    %c0_i32_0 = arith.constant 0 : i32
    return %arg0, %c0_i32 : i32, i32
  }
  func.func @transform_2(%arg0: i32) -> (i32, i32) {
    %c0_i32 = arith.constant 0 : i32
    %c0_i32_0 = arith.constant 0 : i32
    %c0_i32_1 = arith.constant 0 : i32
    return %c0_i32, %c0_i32_0 : i32, i32
  }
  func.func @transform_3(%arg0: i32) -> (i32, i32) {
    %c0_i32 = arith.constant 0 : i32
    %c0_i32_0 = arith.constant 0 : i32
    %c0_i32_1 = arith.constant 0 : i32
    return %c0_i32, %c0_i32_0 : i32, i32
  }
  func.func @transform_4(%arg0: i32) -> (i32, i32) {
    %c0_i32 = arith.constant 0 : i32
    %c0_i32_0 = arith.constant 0 : i32
    %c0_i32_1 = arith.constant 0 : i32
    return %c0_i32, %c0_i32_0 : i32, i32
  }
  func.func @transform_5(%arg0: i32) -> (i32, i32) {
    %c0_i32 = arith.constant 0 : i32
    %c0_i32_0 = arith.constant 0 : i32
    %c0_i32_1 = arith.constant 0 : i32
    return %c0_i32, %c0_i32_0 : i32, i32
  }
  func.func @transform_6(%arg0: i32) -> (i32, i32) {
    %c0_i32 = arith.constant 0 : i32
    %c0_i32_0 = arith.constant 0 : i32
    %c0_i32_1 = arith.constant 0 : i32
    return %c0_i32, %c0_i32_0 : i32, i32
  }
  func.func @transform_7(%arg0: i32) -> (i32, i32) {
    %c0_i32 = arith.constant 0 : i32
    %c0_i32_0 = arith.constant 0 : i32
    %c0_i32_1 = arith.constant 0 : i32
    return %c0_i32, %c0_i32_0 : i32, i32
  }
  func.func @transform_8(%arg0: i32) -> (i32, i32) {
    %c0_i32 = arith.constant 0 : i32
    %c0_i32_0 = arith.constant 0 : i32
    %c0_i32_1 = arith.constant 0 : i32
    return %c0_i32, %c0_i32_0 : i32, i32
  }
  func.func @transform_9(%arg0: i32) -> (i32, i32) {
    %c0_i32 = arith.constant 0 : i32
    %c0_i32_0 = arith.constant 0 : i32
    %c0_i32_1 = arith.constant 0 : i32
    return %c0_i32, %c0_i32_0 : i32, i32
  }
  func.func @transform_10(%arg0: i32) -> (i32, i32) {
    %c0_i32 = arith.constant 0 : i32
    %c0_i32_0 = arith.constant 0 : i32
    %c0_i32_1 = arith.constant 0 : i32
    return %c0_i32, %c0_i32_0 : i32, i32
  }
  func.func @transform_11(%arg0: i32) -> (i32, i32) {
    %c0_i32 = arith.constant 0 : i32
    %c0_i32_0 = arith.constant 0 : i32
    %c0_i32_1 = arith.constant 0 : i32
    return %c0_i32, %c0_i32_0 : i32, i32
  }
  func.func @transform_12(%arg0: i32) -> (i32, i32) {
    %c0_i32 = arith.constant 0 : i32
    %c0_i32_0 = arith.constant 0 : i32
    %c0_i32_1 = arith.constant 0 : i32
    return %c0_i32, %c0_i32_0 : i32, i32
  }
  func.func @transform_13(%arg0: i32) -> (i32, i32) {
    %c0_i32 = arith.constant 0 : i32
    %c0_i32_0 = arith.constant 0 : i32
    %c0_i32_1 = arith.constant 0 : i32
    return %c0_i32, %c0_i32_0 : i32, i32
  }
  func.func @transform_14(%arg0: i32) -> (i32, i32) {
    %c0_i32 = arith.constant 0 : i32
    %c0_i32_0 = arith.constant 0 : i32
    %c0_i32_1 = arith.constant 0 : i32
    return %c0_i32, %c0_i32_0 : i32, i32
  }
  func.func @transform_15(%arg0: i32) -> (i32, i32) {
    %c0_i32 = arith.constant 0 : i32
    %c0_i32_0 = arith.constant 0 : i32
    return %arg0, %c0_i32 : i32, i32
  }
}

</mosaic_0001>

<llo_original>
// kernel: critic_forward.1
$region0: #{critic_forward.1}
  #allocation0 [shape = 'u32[]', space=smem, size = 0x4, offset = 0x4, fixed_abs, tag = 'smem constant byte address 0x4 - core index']
  #allocation1 [shape = 'u32[144,128]{1,0:T(1,128)}', space=vmem, size = 0x12000, scoped, tag = 'internal scratch']
  %s0 = inlined_call_operand.hbm [shape: f32[8,17], index: 0, kind: input, shape index: {}]
  %s1 = inlined_call_operand.hbm [shape: f32[8,6], index: 1, kind: input, shape index: {}]
  %s2 = inlined_call_operand.hbm [shape: f32[17,32], index: 2, kind: input, shape index: {}]
  %s3 = inlined_call_operand.vmem [shape: f32[6,32], index: 3, kind: input, shape index: {}]
  %s4 = inlined_call_operand.vmem [shape: f32[1,32], index: 4, kind: input, shape index: {}]
  %s5 = inlined_call_operand.vmem [shape: f32[32,32], index: 5, kind: input, shape index: {}]
  %s6 = inlined_call_operand.hbm [shape: f32[1,32], index: 6, kind: input, shape index: {}]
  %s7 = inlined_call_operand.vmem [shape: f32[1,32], index: 7, kind: input, shape index: {}]
  %s8 = inlined_call_operand.hbm [shape: f32[17,32], index: 8, kind: input, shape index: {}]
  %s9 = inlined_call_operand.hbm [shape: f32[6,32], index: 9, kind: input, shape index: {}]
  %s10 = inlined_call_operand.hbm [shape: f32[1,32], index: 10, kind: input, shape index: {}]
  %s11 = inlined_call_operand.hbm [shape: f32[32,32], index: 11, kind: input, shape index: {}]
  %s12 = inlined_call_operand.hbm [shape: f32[1,32], index: 12, kind: input, shape index: {}]
  %s13 = inlined_call_operand.vmem [shape: f32[1,32], index: 13, kind: input, shape index: {}]
  %s14 = inlined_call_operand.hbm [shape: f32[1,128], index: 14, kind: input, shape index: {}]
  %s15 = inlined_call_operand.vmem [shape: f32[8,128], index: 15, kind: output, shape index: {}]
  %s16 = sld [smem:[#allocation0]]
  $region110: #{critic_forward.1} parent=0
    _
  %s18 = ssub.s32 1, %s16
  %s19 = scalar_select 0, %s18, %s16
  $region1: #{critic_forward.1} parent=0
    #allocation2 [shape = 'u8[4096]{0}', space=vmem, size = 0x1000, scoped, tag = 'input window, operand 0, single buffered']
    #allocation3 [shape = 's32[1]{0}', space=sflag, size = 0x4, scoped, tag = 'scoped memory for critic_forward.1']
    #allocation4 [shape = 'u8[4096]{0}', space=vmem, size = 0x1000, scoped, tag = 'input window, operand 1, single buffered']
    #allocation5 [shape = 's32[1]{0}', space=sflag, size = 0x4, scoped, tag = 'scoped memory for critic_forward.1']
    #allocation6 [shape = 'u8[12288]{0}', space=vmem, size = 0x3000, scoped, tag = 'input window, operand 2, single buffered']
    #allocation7 [shape = 'u8[512]{0}', space=vmem, size = 0x400, scoped, tag = 'input window, operand 6, single buffered']
    #allocation8 [shape = 's32[1]{0}', space=sflag, size = 0x4, scoped, tag = 'scoped memory for critic_forward.1']
    #allocation9 [shape = 'u8[12288]{0}', space=vmem, size = 0x3000, scoped, tag = 'input window, operand 8, single buffered']
    #allocation10 [shape = 'u8[4096]{0}', space=vmem, size = 0x1000, scoped, tag = 'input window, operand 9, single buffered']
    #allocation11 [shape = 's32[1]{0}', space=sflag, size = 0x4, scoped, tag = 'scoped memory for critic_forward.1']
    #allocation12 [shape = 'u8[512]{0}', space=vmem, size = 0x400, scoped, tag = 'input window, operand 10, single buffered']
    #allocation13 [shape = 'u8[16384]{0}', space=vmem, size = 0x4000, scoped, tag = 'input window, operand 11, single buffered']
    #allocation14 [shape = 's32[1]{0}', space=sflag, size = 0x4, scoped, tag = 'scoped memory for critic_forward.1']
    #allocation15 [shape = 'u8[512]{0}', space=vmem, size = 0x400, scoped, tag = 'input window, operand 12, single buffered']
    #allocation16 [shape = 'u8[512]{0}', space=vmem, size = 0x400, scoped, tag = 'input window, operand 14, single buffered']
    #allocation17 [shape = 's32[1]{0}', space=sflag, size = 0x4, scoped, tag = 'scoped memory for critic_forward.1']
    %20 = vsyncpa [#allocation3], 0
    %21 = vsyncpa [#allocation5], 0
    %22 = vsyncpa [#allocation8], 0
    %23 = vsyncpa [#allocation11], 0
    %24 = vsyncpa [#allocation14], 0
    %25 = vsyncpa [#allocation17], 0
    // Predicated region
    $region2: #{critic_forward.1} parent=1 // pred_check
      _
    $region3: #{critic_forward.1} parent=1 // pred_check_branch
      %27 = sbr.rel (0) target = $region5
    $region4: #{critic_forward.1} parent=1 // pred_region
      %s29 = ssub.s32 128, 128
      %30 = vsyncadd [#allocation3], %s29
      %s32 = sshll.u32 [#allocation2], 4
      %s33 = int_to_ptr.vmem [resolvable:$true] %s32
      %35 = dma.hbm_to_vmem [thread:$0]  %s0, 128, %s33, [#allocation3]
    $region5: #{critic_forward.1} parent=1 // pred_fallthru
      _
    // Predicated region
    $region6: #{critic_forward.1} parent=1 // pred_check
      _
    $region7: #{critic_forward.1} parent=1 // pred_check_branch
      %37 = sbr.rel (0) target = $region9
    $region8: #{critic_forward.1} parent=1 // pred_region
      %s39 = ssub.s32 128, 128
      %40 = vsyncadd [#allocation5], %s39
      %s42 = sshll.u32 [#allocation4], 4
      %s43 = int_to_ptr.vmem [resolvable:$true] %s42
      %45 = dma.hbm_to_vmem [thread:$0]  %s1, 128, %s43, [#allocation5]
    $region9: #{critic_forward.1} parent=1 // pred_fallthru
      _
    // Predicated region
    $region10: #{critic_forward.1} parent=1 // pred_check
      _
    $region11: #{critic_forward.1} parent=1 // pred_check_branch
      %47 = sbr.rel (0) target = $region13
    $region12: #{critic_forward.1} parent=1 // pred_region
      %s49 = ssub.s32 384, 384
      %50 = vsyncadd [#allocation5], %s49
      %s51 = sshll.u32 [#allocation6], 4
      %s52 = int_to_ptr.vmem [resolvable:$true] %s51
      %57 = dma.hbm_to_vmem [thread:$0]  %s2, 384, %s52, [#allocation5], 128, 128, 8
    $region13: #{critic_forward.1} parent=1 // pred_fallthru
      _
    // Predicated region
    $region14: #{critic_forward.1} parent=1 // pred_check
      _
    $region15: #{critic_forward.1} parent=1 // pred_check_branch
      %59 = sbr.rel (0) target = $region17
    $region16: #{critic_forward.1} parent=1 // pred_region
      _
    $region17: #{critic_forward.1} parent=1 // pred_fallthru
      _
    // Predicated region
    $region18: #{critic_forward.1} parent=1 // pred_check
      _
    $region19: #{critic_forward.1} parent=1 // pred_check_branch
      %61 = sbr.rel (0) target = $region21
    $region20: #{critic_forward.1} parent=1 // pred_region
      _
    $region21: #{critic_forward.1} parent=1 // pred_fallthru
      _
    // Predicated region
    $region22: #{critic_forward.1} parent=1 // pred_check
      _
    $region23: #{critic_forward.1} parent=1 // pred_check_branch
      %63 = sbr.rel (0) target = $region25
    $region24: #{critic_forward.1} parent=1 // pred_region
      _
    $region25: #{critic_forward.1} parent=1 // pred_fallthru
      _
    // Predicated region
    $region26: #{critic_forward.1} parent=1 // pred_check
      _
    $region27: #{critic_forward.1} parent=1 // pred_check_branch
      %65 = sbr.rel (0) target = $region29
    $region28: #{critic_forward.1} parent=1 // pred_region
      %s67 = ssub.s32 16, 16
      %68 = vsyncadd [#allocation8], %s67
      %s70 = sshll.u32 [#allocation7], 4
      %s71 = int_to_ptr.vmem [resolvable:$true] %s70
      %73 = dma.hbm_to_vmem [thread:$0]  %s6, 16, %s71, [#allocation8]
    $region29: #{critic_forward.1} parent=1 // pred_fallthru
      _
    // Predicated region
    $region30: #{critic_forward.1} parent=1 // pred_check
      _
    $region31: #{critic_forward.1} parent=1 // pred_check_branch
      %75 = sbr.rel (0) target = $region33
    $region32: #{critic_forward.1} parent=1 // pred_region
      _
    $region33: #{critic_forward.1} parent=1 // pred_fallthru
      _
    // Predicated region
    $region34: #{critic_forward.1} parent=1 // pred_check
      _
    $region35: #{critic_forward.1} parent=1 // pred_check_branch
      %77 = sbr.rel (0) target = $region37
    $region36: #{critic_forward.1} parent=1 // pred_region
      %s79 = ssub.s32 384, 384
      %80 = vsyncadd [#allocation8], %s79
      %s81 = sshll.u32 [#allocation9], 4
      %s82 = int_to_ptr.vmem [resolvable:$true] %s81
      %87 = dma.hbm_to_vmem [thread:$0]  %s8, 384, %s82, [#allocation8], 128, 128, 8
    $region37: #{critic_forward.1} parent=1 // pred_fallthru
      _
    // Predicated region
    $region38: #{critic_forward.1} parent=1 // pred_check
      _
    $region39: #{critic_forward.1} parent=1 // pred_check_branch
      %89 = sbr.rel (0) target = $region41
    $region40: #{critic_forward.1} parent=1 // pred_region
      %s91 = ssub.s32 128, 128
      %92 = vsyncadd [#allocation11], %s91
      %s94 = sshll.u32 [#allocation10], 4
      %s95 = int_to_ptr.vmem [resolvable:$true] %s94
      %97 = dma.hbm_to_vmem [thread:$0]  %s9, 128, %s95, [#allocation11]
    $region41: #{critic_forward.1} parent=1 // pred_fallthru
      _
    // Predicated region
    $region42: #{critic_forward.1} parent=1 // pred_check
      _
    $region43: #{critic_forward.1} parent=1 // pred_check_branch
      %99 = sbr.rel (0) target = $region45
    $region44: #{critic_forward.1} parent=1 // pred_region
      %s101 = ssub.s32 16, 16
      %102 = vsyncadd [#allocation11], %s101
      %s104 = sshll.u32 [#allocation12], 4
      %s105 = int_to_ptr.vmem [resolvable:$true] %s104
      %107 = dma.hbm_to_vmem [thread:$0]  %s10, 16, %s105, [#allocation11]
    $region45: #{critic_forward.1} parent=1 // pred_fallthru
      _
    // Predicated region
    $region46: #{critic_forward.1} parent=1 // pred_check
      _
    $region47: #{critic_forward.1} parent=1 // pred_check_branch
      %109 = sbr.rel (0) target = $region49
    $region48: #{critic_forward.1} parent=1 // pred_region
      %s111 = ssub.s32 512, 512
      %112 = vsyncadd [#allocation14], %s111
      %s113 = sshll.u32 [#allocation13], 4
      %s114 = int_to_ptr.vmem [resolvable:$true] %s113
      %119 = dma.hbm_to_vmem [thread:$0]  %s11, 512, %s114, [#allocation14], 128, 128, 8
    $region49: #{critic_forward.1} parent=1 // pred_fallthru
      _
    // Predicated region
    $region50: #{critic_forward.1} parent=1 // pred_check
      _
    $region51: #{critic_forward.1} parent=1 // pred_check_branch
      %121 = sbr.rel (0) target = $region53
    $region52: #{critic_forward.1} parent=1 // pred_region
      %s123 = ssub.s32 16, 16
      %124 = vsyncadd [#allocation14], %s123
      %s126 = sshll.u32 [#allocation15], 4
      %s127 = int_to_ptr.vmem [resolvable:$true] %s126
      %129 = dma.hbm_to_vmem [thread:$0]  %s12, 16, %s127, [#allocation14]
    $region53: #{critic_forward.1} parent=1 // pred_fallthru
      _
    // Predicated region
    $region54: #{critic_forward.1} parent=1 // pred_check
      _
    $region55: #{critic_forward.1} parent=1 // pred_check_branch
      %131 = sbr.rel (0) target = $region57
    $region56: #{critic_forward.1} parent=1 // pred_region
      _
    $region57: #{critic_forward.1} parent=1 // pred_fallthru
      _
    // Predicated region
    $region58: #{critic_forward.1} parent=1 // pred_check
      _
    $region59: #{critic_forward.1} parent=1 // pred_check_branch
      %133 = sbr.rel (0) target = $region61
    $region60: #{critic_forward.1} parent=1 // pred_region
      %s135 = ssub.s32 16, 16
      %136 = vsyncadd [#allocation17], %s135
      %s138 = sshll.u32 [#allocation16], 4
      %s139 = int_to_ptr.vmem [resolvable:$true] %s138
      %141 = dma.hbm_to_vmem [thread:$0]  %s14, 16, %s139, [#allocation17]
    $region61: #{critic_forward.1} parent=1 // pred_fallthru
      _
    // Predicated region
    $region62: #{critic_forward.1} parent=1 // pred_check
      _
    $region63: #{critic_forward.1} parent=1 // pred_check_branch
      %143 = sbr.rel (0) target = $region65
    $region64: #{critic_forward.1} parent=1 // pred_region
      %144 = dma.done [#allocation3], 128
    $region65: #{critic_forward.1} parent=1 // pred_fallthru
      _
    // Predicated region
    $region66: #{critic_forward.1} parent=1 // pred_check
      _
    $region67: #{critic_forward.1} parent=1 // pred_check_branch
      %146 = sbr.rel (0) target = $region69
    $region68: #{critic_forward.1} parent=1 // pred_region
      %147 = dma.done [#allocation5], 128
    $region69: #{critic_forward.1} parent=1 // pred_fallthru
      _
    // Predicated region
    $region70: #{critic_forward.1} parent=1 // pred_check
      _
    $region71: #{critic_forward.1} parent=1 // pred_check_branch
      %149 = sbr.rel (0) target = $region73
    $region72: #{critic_forward.1} parent=1 // pred_region
      %150 = dma.done [#allocation5], 384
    $region73: #{critic_forward.1} parent=1 // pred_fallthru
      _
    // Predicated region
    $region74: #{critic_forward.1} parent=1 // pred_check
      _
    $region75: #{critic_forward.1} parent=1 // pred_check_branch
      %152 = sbr.rel (0) target = $region77
    $region76: #{critic_forward.1} parent=1 // pred_region
      %153 = dma.done [#allocation8], 16
    $region77: #{critic_forward.1} parent=1 // pred_fallthru
      _
    // Predicated region
    $region78: #{critic_forward.1} parent=1 // pred_check
      _
    $region79: #{critic_forward.1} parent=1 // pred_check_branch
      %155 = sbr.rel (0) target = $region81
    $region80: #{critic_forward.1} parent=1 // pred_region
      %156 = dma.done [#allocation8], 384
    $region81: #{critic_forward.1} parent=1 // pred_fallthru
      _
    // Predicated region
    $region82: #{critic_forward.1} parent=1 // pred_check
      _
    $region83: #{critic_forward.1} parent=1 // pred_check_branch
      %158 = sbr.rel (0) target = $region85
    $region84: #{critic_forward.1} parent=1 // pred_region
      %159 = dma.done [#allocation11], 128
    $region85: #{critic_forward.1} parent=1 // pred_fallthru
      _
    // Predicated region
    $region86: #{critic_forward.1} parent=1 // pred_check
      _
    $region87: #{critic_forward.1} parent=1 // pred_check_branch
      %161 = sbr.rel (0) target = $region89
    $region88: #{critic_forward.1} parent=1 // pred_region
      %162 = dma.done [#allocation11], 16
    $region89: #{critic_forward.1} parent=1 // pred_fallthru
      _
    // Predicated region
    $region90: #{critic_forward.1} parent=1 // pred_check
      _
    $region91: #{critic_forward.1} parent=1 // pred_check_branch
      %164 = sbr.rel (0) target = $region93
    $region92: #{critic_forward.1} parent=1 // pred_region
      %165 = dma.done [#allocation14], 512
    $region93: #{critic_forward.1} parent=1 // pred_fallthru
      _
    // Predicated region
    $region94: #{critic_forward.1} parent=1 // pred_check
      _
    $region95: #{critic_forward.1} parent=1 // pred_check_branch
      %167 = sbr.rel (0) target = $region97
    $region96: #{critic_forward.1} parent=1 // pred_region
      %168 = dma.done [#allocation14], 16
    $region97: #{critic_forward.1} parent=1 // pred_fallthru
      _
    // Predicated region
    $region98: #{critic_forward.1} parent=1 // pred_check
      _
    $region99: #{critic_forward.1} parent=1 // pred_check_branch
      %170 = sbr.rel (0) target = $region101
    $region100: #{critic_forward.1} parent=1 // pred_region
      %171 = dma.done [#allocation17], 16
    $region101: #{critic_forward.1} parent=1 // pred_fallthru
      _
    %v172 = vld [vmem:[#allocation2] sm:$0xff]
    %v173 = vld [vmem:[#allocation4] sm:$0xff]
    %v174 = vld [vmem:[#allocation6] sm:$0xff]
    %v175 = vld [vmem:[#allocation6 + $0x8] sm:$0xff]
    %v176 = vld [vmem:[#allocation6 + $0x10] sm:$0x1]
    %v177 = vld [vmem:[%s3] sm:$0x3f]
    %vm178 = vcmask 48128
    %v180 = vsel %vm178, %v173, 0
    %vm182 = vcmask 1045504
    %v184 = vsel %vm182, %v177, 0
    %186 = vmatprep.subr.mxu0 0.0
    %187 = vmatpush1.msra.mxu0 %v184
    %188 = vmatprep.subr.mxu0 0.0
    %189 = vmatpush1.msra.mxu0 0.0
    %190 = vmatprep.subr.mxu0 0.0
    %191 = vmatpush1.msra.mxu0 0.0
    %192 = vmatprep.subr.mxu0 0.0
    %193 = vmatpush1.msra.mxu0 0.0
    %194 = vmatprep.subr.mxu0 0.0
    %195 = vmatpush1.msra.mxu0 0.0
    %196 = vmatprep.subr.mxu0 0.0
    %197 = vmatpush1.msra.mxu0 0.0
    %198 = vmatprep.subr.mxu0 0.0
    %199 = vmatpush1.msra.mxu0 0.0
    %200 = vmatprep.subr.mxu0 0.0
    %201 = vmatpush1.msra.mxu0 0.0
    %202 = vmatprep.subr.mxu0 0.0
    %203 = vmatpush1.msra.mxu0 0.0
    %204 = vmatprep.subr.mxu0 0.0
    %205 = vmatpush1.msra.mxu0 0.0
    %206 = vmatprep.subr.mxu0 0.0
    %207 = vmatpush1.msra.mxu0 0.0
    %208 = vmatprep.subr.mxu0 0.0
    %209 = vmatpush1.msra.mxu0 0.0
    %210 = vmatprep.subr.mxu0 0.0
    %211 = vmatpush1.msra.mxu0 0.0
    %212 = vmatprep.subr.mxu0 0.0
    %213 = vmatpush1.msra.mxu0 0.0
    %214 = vmatprep.subr.mxu0 0.0
    %215 = vmatpush1.msra.mxu0 0.0
    %216 = vmatprep.subr.mxu0 0.0
    %217 = vmatpush1.msra.mxu0 0.0
    %218 = vmatprep.subr.mxu0 0.0
    %219 = vmatpush1.msra.mxu0 0.0
    %220 = vmatprep.subr.mxu0 0.0
    %221 = vmatpush1.msra.mxu0 0.0
    %222 = vmatprep.subr.mxu0 0.0
    %223 = vmatpush1.msra.mxu0 0.0
    %224 = vmatprep.subr.mxu0 0.0
    %225 = vmatpush1.msra.mxu0 0.0
    %226 = vmatprep.subr.mxu0 0.0
    %227 = vmatpush1.msra.mxu0 0.0
    %228 = vmatprep.subr.mxu0 0.0
    %229 = vmatpush1.msra.mxu0 0.0
    %230 = vmatprep.subr.mxu0 0.0
    %231 = vmatpush1.msra.mxu0 0.0
    %232 = vmatprep.subr.mxu0 0.0
    %233 = vmatpush1.msra.mxu0 0.0
    %234 = vmatprep.subr.mxu0 0.0
    %235 = vmatpush1.msra.mxu0 0.0
    %236 = vmatprep.subr.mxu0 0.0
    %237 = vmatpush1.msra.mxu0 0.0
    %238 = vmatprep.subr.mxu0 0.0
    %239 = vmatpush1.msra.mxu0 0.0
    %240 = vmatprep.subr.mxu0 0.0
    %241 = vmatpush1.msra.mxu0 0.0
    %242 = vmatprep.subr.mxu0 0.0
    %243 = vmatpush1.msra.mxu0 0.0
    %244 = vmatprep.subr.mxu0 0.0
    %245 = vmatpush1.msra.mxu0 0.0
    %246 = vmatprep.subr.mxu0 0.0
    %247 = vmatpush1.msra.mxu0 0.0
    %248 = vmatprep.subr.mxu0 0.0
    %249 = vmatpush1.msra.mxu0 0.0
    %250 = vmatprep.mubr.f32.mxu0 0.0
    %251 = vmatmul.mubr.f32.gmra.mrb[0].mxu0 %v180
    %v252 = vpop.f32.mrb[0].mxu0
    %v253 = vadd.f32 0.0, %v252
    %v254 = vpop.f32.mrb[0].mxu0
    %255 = vdwg.mxu0
    %vm256 = vcmask 138240
    %v258 = vsel %vm256, %v172, 0
    %vm260 = vcmask 1040384
    %v262 = vsel %vm260, %v176, 0
    %264 = vmatprep.subr.mxu0 0.0
    %265 = vmatpush1.msra.mxu0 %v174
    %266 = vmatprep.subr.mxu0 0.0
    %267 = vmatpush1.msra.mxu0 %v175
    %268 = vmatprep.subr.mxu0 0.0
    %269 = vmatpush1.msra.mxu0 %v262
    %270 = vmatprep.subr.mxu0 0.0
    %271 = vmatpush1.msra.mxu0 0.0
    %272 = vmatprep.subr.mxu0 0.0
    %273 = vmatpush1.msra.mxu0 0.0
    %274 = vmatprep.subr.mxu0 0.0
    %275 = vmatpush1.msra.mxu0 0.0
    %276 = vmatprep.subr.mxu0 0.0
    %277 = vmatpush1.msra.mxu0 0.0
    %278 = vmatprep.subr.mxu0 0.0
    %279 = vmatpush1.msra.mxu0 0.0
    %280 = vmatprep.subr.mxu0 0.0
    %281 = vmatpush1.msra.mxu0 0.0
    %282 = vmatprep.subr.mxu0 0.0
    %283 = vmatpush1.msra.mxu0 0.0
    %284 = vmatprep.subr.mxu0 0.0
    %285 = vmatpush1.msra.mxu0 0.0
    %286 = vmatprep.subr.mxu0 0.0
    %287 = vmatpush1.msra.mxu0 0.0
    %288 = vmatprep.subr.mxu0 0.0
    %289 = vmatpush1.msra.mxu0 0.0
    %290 = vmatprep.subr.mxu0 0.0
    %291 = vmatpush1.msra.mxu0 0.0
    %292 = vmatprep.subr.mxu0 0.0
    %293 = vmatpush1.msra.mxu0 0.0
    %294 = vmatprep.subr.mxu0 0.0
    %295 = vmatpush1.msra.mxu0 0.0
    %296 = vmatprep.subr.mxu0 0.0
    %297 = vmatpush1.msra.mxu0 0.0
    %298 = vmatprep.subr.mxu0 0.0
    %299 = vmatpush1.msra.mxu0 0.0
    %300 = vmatprep.subr.mxu0 0.0
    %301 = vmatpush1.msra.mxu0 0.0
    %302 = vmatprep.subr.mxu0 0.0
    %303 = vmatpush1.msra.mxu0 0.0
    %304 = vmatprep.subr.mxu0 0.0
    %305 = vmatpush1.msra.mxu0 0.0
    %306 = vmatprep.subr.mxu0 0.0
    %307 = vmatpush1.msra.mxu0 0.0
    %308 = vmatprep.subr.mxu0 0.0
    %309 = vmatpush1.msra.mxu0 0.0
    %310 = vmatprep.subr.mxu0 0.0
    %311 = vmatpush1.msra.mxu0 0.0
    %312 = vmatprep.subr.mxu0 0.0
    %313 = vmatpush1.msra.mxu0 0.0
    %314 = vmatprep.subr.mxu0 0.0
    %315 = vmatpush1.msra.mxu0 0.0
    %316 = vmatprep.subr.mxu0 0.0
    %317 = vmatpush1.msra.mxu0 0.0
    %318 = vmatprep.subr.mxu0 0.0
    %319 = vmatpush1.msra.mxu0 0.0
    %320 = vmatprep.subr.mxu0 0.0
    %321 = vmatpush1.msra.mxu0 0.0
    %322 = vmatprep.subr.mxu0 0.0
    %323 = vmatpush1.msra.mxu0 0.0
    %324 = vmatprep.subr.mxu0 0.0
    %325 = vmatpush1.msra.mxu0 0.0
    %326 = vmatprep.subr.mxu0 0.0
    %327 = vmatpush1.msra.mxu0 0.0
    %328 = vmatprep.mubr.f32.mxu0 0.0
    %329 = vmatmul.mubr.f32.gmra.mrb[0].mxu0 %v258
    %v330 = vpop.f32.mrb[0].mxu0
    %v331 = vadd.f32 %v253, %v330
    %v332 = vpop.f32.mrb[0].mxu0
    %333 = vdwg.mxu0
    %v334 = vld [vmem:[%s4] sm:$0x1]
    %v336 = vlaneseq
    %v337 = vshrl.u32 %v336, 7
    %v338 = vsub.s32 0, %v337
    %v339 = vrot.slane %v334, %v338
    %v341 = vadd.f32 %v331, %v339
    %v342 = vmax.f32 %v341, 0.0
    %v343 = vld [vmem:[%s5] sm:$0xff]
    %v344 = vld [vmem:[%s5 + $0x8] sm:$0xff]
    %v345 = vld [vmem:[%s5 + $0x10] sm:$0xff]
    %v346 = vld [vmem:[%s5 + $0x18] sm:$0xff]
    %v347 = vld [vmem:[#allocation7] sm:$0x1]
    %v349 = vlaneseq
    %v350 = vshrl.u32 %v349, 7
    %v351 = vsub.s32 0, %v350
    %v352 = vrot.slane %v347, %v351
    %vm354 = vcmask 261120
    %v356 = vsel %vm354, %v342, 0
    %358 = vmatprep.subr.mxu0 0.0
    %359 = vmatpush1.msra.mxu0 %v343
    %360 = vmatprep.subr.mxu0 0.0
    %361 = vmatpush1.msra.mxu0 %v344
    %362 = vmatprep.subr.mxu0 0.0
    %363 = vmatpush1.msra.mxu0 %v345
    %364 = vmatprep.subr.mxu0 0.0
    %365 = vmatpush1.msra.mxu0 %v346
    %366 = vmatprep.subr.mxu0 0.0
    %367 = vmatpush1.msra.mxu0 0.0
    %368 = vmatprep.subr.mxu0 0.0
    %369 = vmatpush1.msra.mxu0 0.0
    %370 = vmatprep.subr.mxu0 0.0
    %371 = vmatpush1.msra.mxu0 0.0
    %372 = vmatprep.subr.mxu0 0.0
    %373 = vmatpush1.msra.mxu0 0.0
    %374 = vmatprep.subr.mxu0 0.0
    %375 = vmatpush1.msra.mxu0 0.0
    %376 = vmatprep.subr.mxu0 0.0
    %377 = vmatpush1.msra.mxu0 0.0
    %378 = vmatprep.subr.mxu0 0.0
    %379 = vmatpush1.msra.mxu0 0.0
    %380 = vmatprep.subr.mxu0 0.0
    %381 = vmatpush1.msra.mxu0 0.0
    %382 = vmatprep.subr.mxu0 0.0
    %383 = vmatpush1.msra.mxu0 0.0
    %384 = vmatprep.subr.mxu0 0.0
    %385 = vmatpush1.msra.mxu0 0.0
    %386 = vmatprep.subr.mxu0 0.0
    %387 = vmatpush1.msra.mxu0 0.0
    %388 = vmatprep.subr.mxu0 0.0
    %389 = vmatpush1.msra.mxu0 0.0
    %390 = vmatprep.subr.mxu0 0.0
    %391 = vmatpush1.msra.mxu0 0.0
    %392 = vmatprep.subr.mxu0 0.0
    %393 = vmatpush1.msra.mxu0 0.0
    %394 = vmatprep.subr.mxu0 0.0
    %395 = vmatpush1.msra.mxu0 0.0
    %396 = vmatprep.subr.mxu0 0.0
    %397 = vmatpush1.msra.mxu0 0.0
    %398 = vmatprep.subr.mxu0 0.0
    %399 = vmatpush1.msra.mxu0 0.0
    %400 = vmatprep.subr.mxu0 0.0
    %401 = vmatpush1.msra.mxu0 0.0
    %402 = vmatprep.subr.mxu0 0.0
    %403 = vmatpush1.msra.mxu0 0.0
    %404 = vmatprep.subr.mxu0 0.0
    %405 = vmatpush1.msra.mxu0 0.0
    %406 = vmatprep.subr.mxu0 0.0
    %407 = vmatpush1.msra.mxu0 0.0
    %408 = vmatprep.subr.mxu0 0.0
    %409 = vmatpush1.msra.mxu0 0.0
    %410 = vmatprep.subr.mxu0 0.0
    %411 = vmatpush1.msra.mxu0 0.0
    %412 = vmatprep.subr.mxu0 0.0
    %413 = vmatpush1.msra.mxu0 0.0
    %414 = vmatprep.subr.mxu0 0.0
    %415 = vmatpush1.msra.mxu0 0.0
    %416 = vmatprep.subr.mxu0 0.0
    %417 = vmatpush1.msra.mxu0 0.0
    %418 = vmatprep.subr.mxu0 0.0
    %419 = vmatpush1.msra.mxu0 0.0
    %420 = vmatprep.subr.mxu0 0.0
    %421 = vmatpush1.msra.mxu0 0.0
    %422 = vmatprep.mubr.f32.mxu0 0.0
    %423 = vmatmul.mubr.f32.gmra.mrb[0].mxu0 %v356
    %v424 = vpop.f32.mrb[0].mxu0
    %v425 = vadd.f32 %v352, %v424
    %v426 = vpop.f32.mrb[0].mxu0
    %427 = vdwg.mxu0
    %v428 = vmax.f32 %v425, 0.0
    %v429 = vld [vmem:[%s7] sm:$0x1]
    %v431 = vlaneseq
    %v432 = vshrl.u32 %v431, 7
    %v433 = vsub.s32 0, %v432
    %v434 = vrot.slane %v429, %v433
    %v436 = vmul.f32 %v428, %v434
    %v437 = vsel %vm354, %v436, 0.0
    %438 = vadd.xlane.f32.xlu0 %v437
    %v439 = vpop.xlane.xlu0 %438
    %v440 = vld [vmem:[#allocation9] sm:$0xff]
    %v441 = vld [vmem:[#allocation9 + $0x8] sm:$0xff]
    %v442 = vld [vmem:[#allocation9 + $0x10] sm:$0x1]
    %v443 = vld [vmem:[#allocation10] sm:$0x3f]
    %v445 = vsel %vm182, %v443, 0
    %447 = vmatprep.subr.mxu0 0.0
    %448 = vmatpush1.msra.mxu0 %v445
    %449 = vmatprep.subr.mxu0 0.0
    %450 = vmatpush1.msra.mxu0 0.0
    %451 = vmatprep.subr.mxu0 0.0
    %452 = vmatpush1.msra.mxu0 0.0
    %453 = vmatprep.subr.mxu0 0.0
    %454 = vmatpush1.msra.mxu0 0.0
    %455 = vmatprep.subr.mxu0 0.0
    %456 = vmatpush1.msra.mxu0 0.0
    %457 = vmatprep.subr.mxu0 0.0
    %458 = vmatpush1.msra.mxu0 0.0
    %459 = vmatprep.subr.mxu0 0.0
    %460 = vmatpush1.msra.mxu0 0.0
    %461 = vmatprep.subr.mxu0 0.0
    %462 = vmatpush1.msra.mxu0 0.0
    %463 = vmatprep.subr.mxu0 0.0
    %464 = vmatpush1.msra.mxu0 0.0
    %465 = vmatprep.subr.mxu0 0.0
    %466 = vmatpush1.msra.mxu0 0.0
    %467 = vmatprep.subr.mxu0 0.0
    %468 = vmatpush1.msra.mxu0 0.0
    %469 = vmatprep.subr.mxu0 0.0
    %470 = vmatpush1.msra.mxu0 0.0
    %471 = vmatprep.subr.mxu0 0.0
    %472 = vmatpush1.msra.mxu0 0.0
    %473 = vmatprep.subr.mxu0 0.0
    %474 = vmatpush1.msra.mxu0 0.0
    %475 = vmatprep.subr.mxu0 0.0
    %476 = vmatpush1.msra.mxu0 0.0
    %477 = vmatprep.subr.mxu0 0.0
    %478 = vmatpush1.msra.mxu0 0.0
    %479 = vmatprep.subr.mxu0 0.0
    %480 = vmatpush1.msra.mxu0 0.0
    %481 = vmatprep.subr.mxu0 0.0
    %482 = vmatpush1.msra.mxu0 0.0
    %483 = vmatprep.subr.mxu0 0.0
    %484 = vmatpush1.msra.mxu0 0.0
    %485 = vmatprep.subr.mxu0 0.0
    %486 = vmatpush1.msra.mxu0 0.0
    %487 = vmatprep.subr.mxu0 0.0
    %488 = vmatpush1.msra.mxu0 0.0
    %489 = vmatprep.subr.mxu0 0.0
    %490 = vmatpush1.msra.mxu0 0.0
    %491 = vmatprep.subr.mxu0 0.0
    %492 = vmatpush1.msra.mxu0 0.0
    %493 = vmatprep.subr.mxu0 0.0
    %494 = vmatpush1.msra.mxu0 0.0
    %495 = vmatprep.subr.mxu0 0.0
    %496 = vmatpush1.msra.mxu0 0.0
    %497 = vmatprep.subr.mxu0 0.0
    %498 = vmatpush1.msra.mxu0 0.0
    %499 = vmatprep.subr.mxu0 0.0
    %500 = vmatpush1.msra.mxu0 0.0
    %501 = vmatprep.subr.mxu0 0.0
    %502 = vmatpush1.msra.mxu0 0.0
    %503 = vmatprep.subr.mxu0 0.0
    %504 = vmatpush1.msra.mxu0 0.0
    %505 = vmatprep.subr.mxu0 0.0
    %506 = vmatpush1.msra.mxu0 0.0
    %507 = vmatprep.subr.mxu0 0.0
    %508 = vmatpush1.msra.mxu0 0.0
    %509 = vmatprep.subr.mxu0 0.0
    %510 = vmatpush1.msra.mxu0 0.0
    %511 = vmatprep.mubr.f32.mxu0 0.0
    %512 = vmatmul.mubr.f32.gmra.mrb[0].mxu0 %v180
    %v513 = vpop.f32.mrb[0].mxu0
    %v514 = vadd.f32 0.0, %v513
    %v515 = vpop.f32.mrb[0].mxu0
    %516 = vdwg.mxu0
    %v518 = vsel %vm260, %v442, 0
    %520 = vmatprep.subr.mxu0 0.0
    %521 = vmatpush1.msra.mxu0 %v440
    %522 = vmatprep.subr.mxu0 0.0
    %523 = vmatpush1.msra.mxu0 %v441
    %524 = vmatprep.subr.mxu0 0.0
    %525 = vmatpush1.msra.mxu0 %v518
    %526 = vmatprep.subr.mxu0 0.0
    %527 = vmatpush1.msra.mxu0 0.0
    %528 = vmatprep.subr.mxu0 0.0
    %529 = vmatpush1.msra.mxu0 0.0
    %530 = vmatprep.subr.mxu0 0.0
    %531 = vmatpush1.msra.mxu0 0.0
    %532 = vmatprep.subr.mxu0 0.0
    %533 = vmatpush1.msra.mxu0 0.0
    %534 = vmatprep.subr.mxu0 0.0
    %535 = vmatpush1.msra.mxu0 0.0
    %536 = vmatprep.subr.mxu0 0.0
    %537 = vmatpush1.msra.mxu0 0.0
    %538 = vmatprep.subr.mxu0 0.0
    %539 = vmatpush1.msra.mxu0 0.0
    %540 = vmatprep.subr.mxu0 0.0
    %541 = vmatpush1.msra.mxu0 0.0
    %542 = vmatprep.subr.mxu0 0.0
    %543 = vmatpush1.msra.mxu0 0.0
    %544 = vmatprep.subr.mxu0 0.0
    %545 = vmatpush1.msra.mxu0 0.0
    %546 = vmatprep.subr.mxu0 0.0
    %547 = vmatpush1.msra.mxu0 0.0
    %548 = vmatprep.subr.mxu0 0.0
    %549 = vmatpush1.msra.mxu0 0.0
    %550 = vmatprep.subr.mxu0 0.0
    %551 = vmatpush1.msra.mxu0 0.0
    %552 = vmatprep.subr.mxu0 0.0
    %553 = vmatpush1.msra.mxu0 0.0
    %554 = vmatprep.subr.mxu0 0.0
    %555 = vmatpush1.msra.mxu0 0.0
    %556 = vmatprep.subr.mxu0 0.0
    %557 = vmatpush1.msra.mxu0 0.0
    %558 = vmatprep.subr.mxu0 0.0
    %559 = vmatpush1.msra.mxu0 0.0
    %560 = vmatprep.subr.mxu0 0.0
    %561 = vmatpush1.msra.mxu0 0.0
    %562 = vmatprep.subr.mxu0 0.0
    %563 = vmatpush1.msra.mxu0 0.0
    %564 = vmatprep.subr.mxu0 0.0
    %565 = vmatpush1.msra.mxu0 0.0
    %566 = vmatprep.subr.mxu0 0.0
    %567 = vmatpush1.msra.mxu0 0.0
    %568 = vmatprep.subr.mxu0 0.0
    %569 = vmatpush1.msra.mxu0 0.0
    %570 = vmatprep.subr.mxu0 0.0
    %571 = vmatpush1.msra.mxu0 0.0
    %572 = vmatprep.subr.mxu0 0.0
    %573 = vmatpush1.msra.mxu0 0.0
    %574 = vmatprep.subr.mxu0 0.0
    %575 = vmatpush1.msra.mxu0 0.0
    %576 = vmatprep.subr.mxu0 0.0
    %577 = vmatpush1.msra.mxu0 0.0
    %578 = vmatprep.subr.mxu0 0.0
    %579 = vmatpush1.msra.mxu0 0.0
    %580 = vmatprep.subr.mxu0 0.0
    %581 = vmatpush1.msra.mxu0 0.0
    %582 = vmatprep.subr.mxu0 0.0
    %583 = vmatpush1.msra.mxu0 0.0
    %584 = vmatprep.mubr.f32.mxu0 0.0
    %585 = vmatmul.mubr.f32.gmra.mrb[0].mxu0 %v258
    %v586 = vpop.f32.mrb[0].mxu0
    %v587 = vadd.f32 %v514, %v586
    %v588 = vpop.f32.mrb[0].mxu0
    %589 = vdwg.mxu0
    %v590 = vld [vmem:[#allocation12] sm:$0x1]
    %v592 = vlaneseq
    %v593 = vshrl.u32 %v592, 7
    %v594 = vsub.s32 0, %v593
    %v595 = vrot.slane %v590, %v594
    %v597 = vadd.f32 %v587, %v595
    %v598 = vmax.f32 %v597, 0.0
    %v599 = vld [vmem:[#allocation13] sm:$0xff]
    %v600 = vld [vmem:[#allocation13 + $0x8] sm:$0xff]
    %v601 = vld [vmem:[#allocation13 + $0x10] sm:$0xff]
    %v602 = vld [vmem:[#allocation13 + $0x18] sm:$0xff]
    %v603 = vld [vmem:[#allocation15] sm:$0x1]
    %v605 = vlaneseq
    %v606 = vshrl.u32 %v605, 7
    %v607 = vsub.s32 0, %v606
    %v608 = vrot.slane %v603, %v607
    %v611 = vsel %vm354, %v598, 0
    %613 = vmatprep.subr.mxu0 0.0
    %614 = vmatpush1.msra.mxu0 %v599
    %615 = vmatprep.subr.mxu0 0.0
    %616 = vmatpush1.msra.mxu0 %v600
    %617 = vmatprep.subr.mxu0 0.0
    %618 = vmatpush1.msra.mxu0 %v601
    %619 = vmatprep.subr.mxu0 0.0
    %620 = vmatpush1.msra.mxu0 %v602
    %621 = vmatprep.subr.mxu0 0.0
    %622 = vmatpush1.msra.mxu0 0.0
    %623 = vmatprep.subr.mxu0 0.0
    %624 = vmatpush1.msra.mxu0 0.0
    %625 = vmatprep.subr.mxu0 0.0
    %626 = vmatpush1.msra.mxu0 0.0
    %627 = vmatprep.subr.mxu0 0.0
    %628 = vmatpush1.msra.mxu0 0.0
    %629 = vmatprep.subr.mxu0 0.0
    %630 = vmatpush1.msra.mxu0 0.0
    %631 = vmatprep.subr.mxu0 0.0
    %632 = vmatpush1.msra.mxu0 0.0
    %633 = vmatprep.subr.mxu0 0.0
    %634 = vmatpush1.msra.mxu0 0.0
    %635 = vmatprep.subr.mxu0 0.0
    %636 = vmatpush1.msra.mxu0 0.0
    %637 = vmatprep.subr.mxu0 0.0
    %638 = vmatpush1.msra.mxu0 0.0
    %639 = vmatprep.subr.mxu0 0.0
    %640 = vmatpush1.msra.mxu0 0.0
    %641 = vmatprep.subr.mxu0 0.0
    %642 = vmatpush1.msra.mxu0 0.0
    %643 = vmatprep.subr.mxu0 0.0
    %644 = vmatpush1.msra.mxu0 0.0
    %645 = vmatprep.subr.mxu0 0.0
    %646 = vmatpush1.msra.mxu0 0.0
    %647 = vmatprep.subr.mxu0 0.0
    %648 = vmatpush1.msra.mxu0 0.0
    %649 = vmatprep.subr.mxu0 0.0
    %650 = vmatpush1.msra.mxu0 0.0
    %651 = vmatprep.subr.mxu0 0.0
    %652 = vmatpush1.msra.mxu0 0.0
    %653 = vmatprep.subr.mxu0 0.0
    %654 = vmatpush1.msra.mxu0 0.0
    %655 = vmatprep.subr.mxu0 0.0
    %656 = vmatpush1.msra.mxu0 0.0
    %657 = vmatprep.subr.mxu0 0.0
    %658 = vmatpush1.msra.mxu0 0.0
    %659 = vmatprep.subr.mxu0 0.0
    %660 = vmatpush1.msra.mxu0 0.0
    %661 = vmatprep.subr.mxu0 0.0
    %662 = vmatpush1.msra.mxu0 0.0
    %663 = vmatprep.subr.mxu0 0.0
    %664 = vmatpush1.msra.mxu0 0.0
    %665 = vmatprep.subr.mxu0 0.0
    %666 = vmatpush1.msra.mxu0 0.0
    %667 = vmatprep.subr.mxu0 0.0
    %668 = vmatpush1.msra.mxu0 0.0
    %669 = vmatprep.subr.mxu0 0.0
    %670 = vmatpush1.msra.mxu0 0.0
    %671 = vmatprep.subr.mxu0 0.0
    %672 = vmatpush1.msra.mxu0 0.0
    %673 = vmatprep.subr.mxu0 0.0
    %674 = vmatpush1.msra.mxu0 0.0
    %675 = vmatprep.subr.mxu0 0.0
    %676 = vmatpush1.msra.mxu0 0.0
    %677 = vmatprep.mubr.f32.mxu0 0.0
    %678 = vmatmul.mubr.f32.gmra.mrb[0].mxu0 %v611
    %v679 = vpop.f32.mrb[0].mxu0
    %v680 = vadd.f32 %v608, %v679
    %v681 = vpop.f32.mrb[0].mxu0
    %682 = vdwg.mxu0
    %v683 = vmax.f32 %v680, 0.0
    %v684 = vld [vmem:[%s13] sm:$0x1]
    %v686 = vlaneseq
    %v687 = vshrl.u32 %v686, 7
    %v688 = vsub.s32 0, %v687
    %v689 = vrot.slane %v684, %v688
    %v691 = vmul.f32 %v683, %v689
    %v692 = vsel %vm354, %v691, 0.0
    %693 = vadd.xlane.f32.xlu0 %v692
    %v694 = vpop.xlane.xlu0 %693
    %v695 = vlaneseq
    %v696 = vand.u32 %v695, 127
    %vm697 = vcmp.eq.s32.totalorder %v696, 0
    %vm698 = vcmp.eq.s32.totalorder %v696, 1
    %v699 = vsel %vm698, %v694, 0.0
    %v700 = vsel %vm697, %v439, %v699
    %v701 = vld [vmem:[#allocation16] sm:$0x1]
    %v703 = vlaneseq
    %v704 = vshrl.u32 %v703, 7
    %v705 = vsub.s32 0, %v704
    %v706 = vrot.slane %v701, %v705
    %v708 = vadd.f32 %v700, %v706
    %709 = vst [vmem:[%s15] sm:$0xff] %v708
    // Predicated region
    $region102: #{critic_forward.1} parent=1 // pred_check
      _
    $region103: #{critic_forward.1} parent=1 // pred_check_branch
      %711 = sbr.rel (0) target = $region105
    $region104: #{critic_forward.1} parent=1 // pred_region
      _
    $region105: #{critic_forward.1} parent=1 // pred_fallthru
      _
    // Predicated region
    $region106: #{critic_forward.1} parent=1 // pred_check
      _
    $region107: #{critic_forward.1} parent=1 // pred_check_branch
      %713 = sbr.rel (0) target = $region109
    $region108: #{critic_forward.1} parent=1 // pred_region
      _
    $region109: #{critic_forward.1} parent=1 // pred_fallthru
      _
    %714 = vsyncpa [#allocation3], 1
    %715 = vsyncpa [#allocation5], 1
    %716 = vsyncpa [#allocation8], 1
    %717 = vsyncpa [#allocation11], 1
    %718 = vsyncpa [#allocation14], 1
    %719 = vsyncpa [#allocation17], 1

</llo_original>
